<compile_context>
chip_gen: v5e
topology: v5e:2x2
jax: 0.10.0
libtpu: 0.0.40
codegen_flags: <defaults>
</compile_context>

<pallas_src>
import numpy as np
import jax
import jax.numpy as jnp
from jax import lax
from jax.experimental import pallas as pl
from jax.experimental.pallas import tpu as pltpu


# -----------------------------------------------------------------------------
# Pallas kernel: fused FCN16 decode head (per-sample grid step)
# -----------------------------------------------------------------------------
def _fcn16_head_kernel(feat4_ref, fconv7_ref, wc_ref, bc_ref, w4_ref, wf_ref,
                       b_ref, up1_ref, up2_ref, o_ref):
    # feat4_ref:  (1, C4, S4)   bf16   feat4 features, lanes = flattened H4*W4
    # fconv7_ref: (1, C7, Sf)   bf16   fconn after 7x7 conv + ReLU
    # wc_ref:     (C7o, C7)     bf16   fconn 1x1 conv weight
    # bc_ref:     (C7o, 1)      f32    fconn 1x1 conv bias
    # w4_ref:     (NC, C4)      bf16   score_feat4 weight (plain, no block-diagonal)
    # wf_ref:     (NC, C7o)     bf16   score_fconn weight
    # b_ref:      (NC, 2)       f32    packed [b_score_feat4 | b_score_fconn]
    # up1_ref:    (Sf, S4)      bf16   bilinear (align_corners=True) operator, transposed
    # up2_ref:    (S4, S)       bf16   bilinear (align_corners=True) operator, transposed
    # o_ref:      (1, NC, S)    f32    lane-dense output (S multiple of 128)
    f4 = feat4_ref[0]                    # (C4, S4)
    f7 = fconv7_ref[0]                   # (C7, Sf)
    b = b_ref[...]                       # (NC, 2)

    # fconn: Conv2d 1x1 + ReLU (Dropout = identity in eval mode), f32 accumulation.
    h = jnp.maximum(
        jnp.dot(wc_ref[...], f7, preferred_element_type=jnp.float32) + bc_ref[...],
        0.0)                                                             # (C7o, Sf) f32

    # 1x1 score convs (bias add broadcast along lanes).
    s4 = jnp.dot(w4_ref[...], f4, preferred_element_type=jnp.float32) + b[:, 0:1]   # (NC, S4)
    sf = jnp.dot(wf_ref[...], h.astype(jnp.bfloat16),
                 preferred_element_type=jnp.float32) + b[:, 1:2]                    # (NC, Sf)

    # Upsample score_fconn to feat4's spatial size and add the skip connection.
    score = jnp.dot(sf.astype(jnp.bfloat16), up1_ref[...],
                    preferred_element_type=jnp.float32) + s4                        # (NC, S4)

    # Final upsample to the input spatial size; unmasked, lane-dense store.
    o_ref[0] = jnp.dot(score.astype(jnp.bfloat16), up2_ref[...],
                       preferred_element_type=jnp.float32).astype(o_ref.dtype)      # (NC, S)


# -----------------------------------------------------------------------------
# Bilinear (align_corners=True == F.upsample_bilinear) 1-D factor
# -----------------------------------------------------------------------------
def _bilinear_1d(out_size, in_size):
    a = np.zeros((out_size, in_size), np.float32)
    for o in range(out_size):
        pos = 0.0 if out_size == 1 else o * (in_size - 1) / (out_size - 1)
        i0 = min(int(np.floor(pos)), in_size - 1)
        i1 = min(i0 + 1, in_size - 1)
        frac = pos - i0
        a[o, i0] += 1.0 - frac
        a[o, i1] += frac
    return a


# -----------------------------------------------------------------------------
# Wrapper: layout plumbing + pallas_call
# -----------------------------------------------------------------------------
def fcn16_head_forward(feat4, fconv7, wc, bc, w_score4, b_score4,
                       w_scoref, b_scoref, out_size):
    """feat4: (N,C4,H4,W4), fconv7: (N,C7,Hf,Wf) -> (N, num_classes, H, W) f32."""
    n, c4, h4, ww4 = feat4.shape
    _, c7, hf, wwf = fconv7.shape
    c7o = wc.shape[0]
    nc = w_score4.shape[0]
    out_h, out_w = out_size
    s4 = h4 * ww4
    sf = hf * wwf
    s_out = out_h * out_w

    # Channel-major, lane-dense layout (pure reshapes, no transposes); bf16 MXU operands.
    feat4_2d = feat4.reshape(n, c4, s4).astype(jnp.bfloat16)
    fconv7_2d = fconv7.reshape(n, c7, sf).astype(jnp.bfloat16)
    wc2 = wc.reshape(c7o, c7).astype(jnp.bfloat16)
    bc2 = bc.reshape(c7o, 1).astype(jnp.float32)
    w4_2 = w_score4.reshape(nc, c4).astype(jnp.bfloat16)
    wf_2 = w_scoref.reshape(nc, c7o).astype(jnp.bfloat16)
    b_pack = jnp.stack([b_score4, b_scoref], axis=1).astype(jnp.float32)      # (NC, 2)

    # Spatial operators from separable 1-D factors, transposed so spatial stays on lanes.
    up1_t = jnp.asarray(np.kron(_bilinear_1d(h4, hf), _bilinear_1d(ww4, wwf)).T,
                        dtype=jnp.bfloat16)                                   # (Sf, S4)
    up2_t = jnp.asarray(np.kron(_bilinear_1d(out_h, h4), _bilinear_1d(out_w, ww4)).T,
                        dtype=jnp.bfloat16)                                   # (S4, S)

    out2d = pl.pallas_call(
        _fcn16_head_kernel,
        out_shape=jax.ShapeDtypeStruct((n, nc, s_out), jnp.float32),
        grid=(n,),
        in_specs=[
            pl.BlockSpec((1, c4, s4), lambda i: (i, 0, 0)),
            pl.BlockSpec((1, c7, sf), lambda i: (i, 0, 0)),
            pl.BlockSpec((c7o, c7), lambda i: (0, 0)),
            pl.BlockSpec((c7o, 1), lambda i: (0, 0)),
            pl.BlockSpec((nc, c4), lambda i: (0, 0)),
            pl.BlockSpec((nc, c7o), lambda i: (0, 0)),
            pl.BlockSpec((nc, 2), lambda i: (0, 0)),
            pl.BlockSpec((sf, s4), lambda i: (0, 0)),
            pl.BlockSpec((s4, s_out), lambda i: (0, 0)),
        ],
        out_specs=pl.BlockSpec((1, nc, s_out), lambda i: (i, 0, 0)),
        compiler_params=pltpu.CompilerParams(
            dimension_semantics=("parallel",),        # megacore-shards batch on v7x
            vmem_limit_bytes=32 * 1024 * 1024),       # << 64 MiB (v7x) budget
    )(feat4_2d, fconv7_2d, wc2, bc2, w4_2, wf_2, b_pack, up1_t, up2_t)

    return out2d.reshape(n, nc, out_h, out_w)


# -----------------------------------------------------------------------------
# Reduced-width backbone stand-in (plain JAX, f32) — see TODO(synk) at top.
# -----------------------------------------------------------------------------
def _conv(x, w, b, padding):
    y = lax.conv_general_dilated(x, w, window_strides=(1, 1), padding=padding,
                                 dimension_numbers=('NCHW', 'OIHW', 'NCHW'))
    return y + b[None, :, None, None]


def _relu(x):
    return jnp.maximum(x, 0.0)


def _maxpool2(x):
    return lax.reduce_window(x, -jnp.inf, lax.max, (1, 1, 2, 2), (1, 1, 2, 2), 'VALID')


def _init_conv(key, cout, cin, kh, kw):
    return jax.random.normal(key, (cout, cin, kh, kw), jnp.float32) / np.sqrt(cin * kh * kw)


def _backbone(x, p):
    # feats (VGG conv1-conv3 stand-in): two conv+relu+pool stages -> H/4
    h = _maxpool2(_relu(_conv(x, p['w1'], p['b1'], 'SAME')))
    feats = _maxpool2(_relu(_conv(h, p['w2'], p['b2'], 'SAME')))
    # feat4 / feat5 (VGG conv4 / conv5 stand-ins, no further pooling as in piwise FCN16)
    feat4 = _relu(_conv(feats, p['w3'], p['b3'], 'SAME'))
    feat5 = _relu(_conv(feat4, p['w4'], p['b4'], 'SAME'))
    # fconn first half: Conv2d(., ., 7) VALID + ReLU (Dropout = identity)
    fconv7 = _relu(_conv(feat5, p['w7'], p['b7'], 'VALID'))
    return feat4, fconv7


# -----------------------------------------------------------------------------
# Pure-jnp f32 reference for the head (independent of the kernel path)
# -----------------------------------------------------------------------------
def _head_reference(feat4, fconv7, wc, bc, w_s4, b_s4, w_sf, b_sf, out_size):
    n, c4, h4, ww4 = feat4.shape
    _, c7, hf, wwf = fconv7.shape
    c7o = wc.shape[0]
    nc = w_s4.shape[0]
    out_h, out_w = out_size
    f7 = fconv7.reshape(n, c7, hf * wwf)
    h = jnp.maximum(jnp.einsum('oc,ncs->nos', wc.reshape(c7o, c7), f7)
                    + bc.reshape(1, c7o, 1), 0.0)
    s4 = jnp.einsum('oc,ncs->nos', w_s4.reshape(nc, c4),
                    feat4.reshape(n, c4, h4 * ww4)) + b_s4.reshape(1, nc, 1)
    sf = jnp.einsum('oc,ncs->nos', w_sf.reshape(nc, c7o), h) + b_sf.reshape(1, nc, 1)
    up1 = jnp.asarray(np.kron(_bilinear_1d(h4, hf), _bilinear_1d(ww4, wwf)))       # (S4, Sf)
    score = jnp.einsum('ps,nos->nop', up1, sf) + s4
    up2 = jnp.asarray(np.kron(_bilinear_1d(out_h, h4), _bilinear_1d(out_w, ww4)))  # (S, S4)
    out = jnp.einsum('ps,nos->nop', up2, score)
    return out.reshape(n, nc, out_h, out_w)


if __name__ == "__main__":
    # Small stand-in shapes: x (2,3,32,32); VGG widths 64..512/4096 scaled to 8/16/32;
    # num_classes = 8.  feat4 at H/4 = 8x8; fconn spatial = 8-6 = 2x2 (7x7 valid conv).
    N, CIN, H, W = 2, 3, 32, 32
    C_FEATS, C4, C5, C7, NC = 8, 16, 16, 32, 8

    key = jax.random.PRNGKey(0)
    k = jax.random.split(key, 20)
    x = jax.random.normal(k[0], (N, CIN, H, W), dtype=jnp.float32)

    params = {
        'w1': _init_conv(k[1], C_FEATS, CIN, 3, 3), 'b1': 0.1 * jax.random.normal(k[2], (C_FEATS,)),
        'w2': _init_conv(k[3], C_FEATS, C_FEATS, 3, 3), 'b2': 0.1 * jax.random.normal(k[4], (C_FEATS,)),
        'w3': _init_conv(k[5], C4, C_FEATS, 3, 3), 'b3': 0.1 * jax.random.normal(k[6], (C4,)),
        'w4': _init_conv(k[7], C5, C4, 3, 3), 'b4': 0.1 * jax.random.normal(k[8], (C5,)),
        'w7': _init_conv(k[9], C7, C5, 7, 7), 'b7': 0.1 * jax.random.normal(k[10], (C7,)),
    }
    # Head parameters (the layers computed inside the Pallas kernel).
    wc = _init_conv(k[11], C7, C7, 1, 1)
    bc = 0.1 * jax.random.normal(k[12], (C7,))
    w_s4 = _init_conv(k[13], NC, C4, 1, 1)
    b_s4 = 0.1 * jax.random.normal(k[14], (NC,))
    w_sf = _init_conv(k[15], NC, C7, 1, 1)
    b_sf = 0.1 * jax.random.normal(k[16], (NC,))

    feat4, fconv7 = _backbone(x, params)

    out = fcn16_head_forward(feat4, fconv7, wc, bc, w_s4, b_s4, w_sf, b_sf,
                             out_size=(H, W))
    out = jax.block_until_ready(out)

    ref = _head_reference(feat4, fconv7, wc, bc, w_s4, b_s4, w_sf, b_sf, (H, W))
    assert out.shape == (N, NC, H, W), out.shape
    # bf16 MXU operands with f32 accumulation -> ~0.5-1% deviation vs the f32 reference.
    assert np.allclose(np.asarray(out), np.asarray(ref), rtol=2e-2, atol=2e-2)

    print("KERNEL_OK")
</pallas_src>

<mosaic_0001>
module attributes {stable_mosaic.version = 11 : i64} {
  func.func @_fcn16_head_kernel(%arg0: i32, %arg1: memref<1x16x64xbf16, #tpu.memory_space<vmem>>, %arg2: memref<1x32x4xbf16, #tpu.memory_space<vmem>>, %arg3: memref<32x32xbf16, #tpu.memory_space<vmem>>, %arg4: memref<32x1xf32, #tpu.memory_space<vmem>>, %arg5: memref<8x16xbf16, #tpu.memory_space<vmem>>, %arg6: memref<8x32xbf16, #tpu.memory_space<vmem>>, %arg7: memref<8x2xf32, #tpu.memory_space<vmem>>, %arg8: memref<4x64xbf16, #tpu.memory_space<vmem>>, %arg9: memref<64x1024xbf16, #tpu.memory_space<vmem>>, %arg10: memref<1x8x1024xf32, #tpu.memory_space<vmem>>) attributes {dimension_semantics = [#tpu.dimension_semantics<parallel>], iteration_bounds = array<i64: 2>, scalar_prefetch = 0 : i64, scratch_operands = 0 : i64, tpu.core_type = #tpu.core_type<tc>, window_params = [{transform_indices = @transform_0, window_bounds = array<i64: 1, 16, 64>}, {transform_indices = @transform_1, window_bounds = array<i64: 1, 32, 4>}, {pipeline_mode = #tpu.pipeline_mode<synchronous>, transform_indices = @transform_2, window_bounds = array<i64: 32, 32>}, {pipeline_mode = #tpu.pipeline_mode<synchronous>, transform_indices = @transform_3, window_bounds = array<i64: 32, 1>}, {pipeline_mode = #tpu.pipeline_mode<synchronous>, transform_indices = @transform_4, window_bounds = array<i64: 8, 16>}, {pipeline_mode = #tpu.pipeline_mode<synchronous>, transform_indices = @transform_5, window_bounds = array<i64: 8, 32>}, {pipeline_mode = #tpu.pipeline_mode<synchronous>, transform_indices = @transform_6, window_bounds = array<i64: 8, 2>}, {pipeline_mode = #tpu.pipeline_mode<synchronous>, transform_indices = @transform_7, window_bounds = array<i64: 4, 64>}, {pipeline_mode = #tpu.pipeline_mode<synchronous>, transform_indices = @transform_8, window_bounds = array<i64: 64, 1024>}, {transform_indices = @transform_9, window_bounds = array<i64: 1, 8, 1024>}]} {
    %c0 = arith.constant 0 : index
    %c0_0 = arith.constant 0 : index
    %c0_1 = arith.constant 0 : index
    %0 = vector.load %arg1[%c0, %c0_0, %c0_1] : memref<1x16x64xbf16, #tpu.memory_space<vmem>>, vector<1x16x64xbf16>
    %1 = vector.shape_cast %0 : vector<1x16x64xbf16> to vector<16x64xbf16>
    %c0_2 = arith.constant 0 : index
    %c0_3 = arith.constant 0 : index
    %c0_4 = arith.constant 0 : index
    %2 = vector.load %arg2[%c0_2, %c0_3, %c0_4] : memref<1x32x4xbf16, #tpu.memory_space<vmem>>, vector<1x32x4xbf16>
    %3 = vector.shape_cast %2 : vector<1x32x4xbf16> to vector<32x4xbf16>
    %c0_5 = arith.constant 0 : index
    %c0_6 = arith.constant 0 : index
    %4 = vector.load %arg7[%c0_5, %c0_6] : memref<8x2xf32, #tpu.memory_space<vmem>>, vector<8x2xf32>
    %c0_7 = arith.constant 0 : index
    %c0_8 = arith.constant 0 : index
    %5 = vector.load %arg3[%c0_7, %c0_8] : memref<32x32xbf16, #tpu.memory_space<vmem>>, vector<32x32xbf16>
    %cst = arith.constant dense<0.000000e+00> : vector<32x4xf32>
    %6 = tpu.matmul %5, %3, %cst {dimension_numbers = #tpu.dot_dimension_numbers<[1], [0], [0], [1], [0, 0, 1, 1], [], []>} : vector<32x32xbf16>, vector<32x4xbf16>, vector<32x4xf32> -> vector<32x4xf32>
    %c0_9 = arith.constant 0 : index
    %c0_10 = arith.constant 0 : index
    %7 = vector.load %arg4[%c0_9, %c0_10] : memref<32x1xf32, #tpu.memory_space<vmem>>, vector<32x1xf32>
    %8 = vector.broadcast %7 : vector<32x1xf32> to vector<32x4xf32>
    %9 = arith.addf %6, %8 : vector<32x4xf32>
    %cst_11 = arith.constant 0.000000e+00 : f32
    %10 = vector.broadcast %cst_11 : f32 to vector<32x4xf32>
    %11 = arith.maximumf %9, %10 : vector<32x4xf32>
    %c0_12 = arith.constant 0 : index
    %c0_13 = arith.constant 0 : index
    %12 = vector.load %arg5[%c0_12, %c0_13] : memref<8x16xbf16, #tpu.memory_space<vmem>>, vector<8x16xbf16>
    %cst_14 = arith.constant dense<0.000000e+00> : vector<8x64xf32>
    %13 = tpu.matmul %12, %1, %cst_14 {dimension_numbers = #tpu.dot_dimension_numbers<[1], [0], [0], [1], [0, 0, 1, 1], [], []>} : vector<8x16xbf16>, vector<16x64xbf16>, vector<8x64xf32> -> vector<8x64xf32>
    %14 = vector.extract_strided_slice %4 {offsets = [0, 0], sizes = [8, 1], strides = [1, 1]} : vector<8x2xf32> to vector<8x1xf32>
    %15 = vector.broadcast %14 : vector<8x1xf32> to vector<8x64xf32>
    %16 = arith.addf %13, %15 : vector<8x64xf32>
    %c0_15 = arith.constant 0 : index
    %c0_16 = arith.constant 0 : index
    %17 = vector.load %arg6[%c0_15, %c0_16] : memref<8x32xbf16, #tpu.memory_space<vmem>>, vector<8x32xbf16>
    %18 = arith.truncf %11 : vector<32x4xf32> to vector<32x4xbf16>
    %cst_17 = arith.constant dense<0.000000e+00> : vector<8x4xf32>
    %19 = tpu.matmul %17, %18, %cst_17 {dimension_numbers = #tpu.dot_dimension_numbers<[1], [0], [0], [1], [0, 0, 1, 1], [], []>} : vector<8x32xbf16>, vector<32x4xbf16>, vector<8x4xf32> -> vector<8x4xf32>
    %20 = vector.extract_strided_slice %4 {offsets = [0, 1], sizes = [8, 1], strides = [1, 1]} : vector<8x2xf32> to vector<8x1xf32>
    %21 = vector.broadcast %20 : vector<8x1xf32> to vector<8x4xf32>
    %22 = arith.addf %19, %21 : vector<8x4xf32>
    %23 = arith.truncf %22 : vector<8x4xf32> to vector<8x4xbf16>
    %c0_18 = arith.constant 0 : index
    %c0_19 = arith.constant 0 : index
    %24 = vector.load %arg8[%c0_18, %c0_19] : memref<4x64xbf16, #tpu.memory_space<vmem>>, vector<4x64xbf16>
    %cst_20 = arith.constant dense<0.000000e+00> : vector<8x64xf32>
    %25 = tpu.matmul %23, %24, %cst_20 {dimension_numbers = #tpu.dot_dimension_numbers<[1], [0], [0], [1], [0, 0, 1, 1], [], []>} : vector<8x4xbf16>, vector<4x64xbf16>, vector<8x64xf32> -> vector<8x64xf32>
    %26 = arith.addf %25, %16 : vector<8x64xf32>
    %27 = arith.truncf %26 : vector<8x64xf32> to vector<8x64xbf16>
    %c0_21 = arith.constant 0 : index
    %c0_22 = arith.constant 0 : index
    %28 = vector.load %arg9[%c0_21, %c0_22] : memref<64x1024xbf16, #tpu.memory_space<vmem>>, vector<64x1024xbf16>
    %cst_23 = arith.constant dense<0.000000e+00> : vector<8x1024xf32>
    %29 = tpu.matmul %27, %28, %cst_23 {dimension_numbers = #tpu.dot_dimension_numbers<[1], [0], [0], [1], [0, 0, 1, 1], [], []>} : vector<8x64xbf16>, vector<64x1024xbf16>, vector<8x1024xf32> -> vector<8x1024xf32>
    %c0_24 = arith.constant 0 : index
    %c0_25 = arith.constant 0 : index
    %c0_26 = arith.constant 0 : index
    %30 = vector.load %arg10[%c0_24, %c0_25, %c0_26] : memref<1x8x1024xf32, #tpu.memory_space<vmem>>, vector<1x8x1024xf32>
    %31 = vector.shape_cast %30 : vector<1x8x1024xf32> to vector<8x1024xf32>
    %32 = vector.shape_cast %29 : vector<8x1024xf32> to vector<1x8x1024xf32>
    tpu.vector_store %arg10[%c0_24, %c0_25, %c0_26], %32 {strides = array<i32>} : memref<1x8x1024xf32, #tpu.memory_space<vmem>>, vector<1x8x1024xf32>,
    return
  }
  func.func @transform_0(%arg0: i32) -> (i32, i32, i32) {
    %c0_i32 = arith.constant 0 : i32
    %c0_i32_0 = arith.constant 0 : i32
    %c0_i32_1 = arith.constant 0 : i32
    return %arg0, %c0_i32, %c0_i32_0 : i32, i32, i32
  }
  func.func @transform_1(%arg0: i32) -> (i32, i32, i32) {
    %c0_i32 = arith.constant 0 : i32
    %c0_i32_0 = arith.constant 0 : i32
    %c0_i32_1 = arith.constant 0 : i32
    return %arg0, %c0_i32, %c0_i32_0 : i32, i32, i32
  }
  func.func @transform_2(%arg0: i32) -> (i32, i32) {
    %c0_i32 = arith.constant 0 : i32
    %c0_i32_0 = arith.constant 0 : i32
    %c0_i32_1 = arith.constant 0 : i32
    return %c0_i32, %c0_i32_0 : i32, i32
  }
  func.func @transform_3(%arg0: i32) -> (i32, i32) {
    %c0_i32 = arith.constant 0 : i32
    %c0_i32_0 = arith.constant 0 : i32
    %c0_i32_1 = arith.constant 0 : i32
    return %c0_i32, %c0_i32_0 : i32, i32
  }
  func.func @transform_4(%arg0: i32) -> (i32, i32) {
    %c0_i32 = arith.constant 0 : i32
    %c0_i32_0 = arith.constant 0 : i32
    %c0_i32_1 = arith.constant 0 : i32
    return %c0_i32, %c0_i32_0 : i32, i32
  }
  func.func @transform_5(%arg0: i32) -> (i32, i32) {
    %c0_i32 = arith.constant 0 : i32
    %c0_i32_0 = arith.constant 0 : i32
    %c0_i32_1 = arith.constant 0 : i32
    return %c0_i32, %c0_i32_0 : i32, i32
  }
  func.func @transform_6(%arg0: i32) -> (i32, i32) {
    %c0_i32 = arith.constant 0 : i32
    %c0_i32_0 = arith.constant 0 : i32
    %c0_i32_1 = arith.constant 0 : i32
    return %c0_i32, %c0_i32_0 : i32, i32
  }
  func.func @transform_7(%arg0: i32) -> (i32, i32) {
    %c0_i32 = arith.constant 0 : i32
    %c0_i32_0 = arith.constant 0 : i32
    %c0_i32_1 = arith.constant 0 : i32
    return %c0_i32, %c0_i32_0 : i32, i32
  }
  func.func @transform_8(%arg0: i32) -> (i32, i32) {
    %c0_i32 = arith.constant 0 : i32
    %c0_i32_0 = arith.constant 0 : i32
    %c0_i32_1 = arith.constant 0 : i32
    return %c0_i32, %c0_i32_0 : i32, i32
  }
  func.func @transform_9(%arg0: i32) -> (i32, i32, i32) {
    %c0_i32 = arith.constant 0 : i32
    %c0_i32_0 = arith.constant 0 : i32
    %c0_i32_1 = arith.constant 0 : i32
    return %arg0, %c0_i32, %c0_i32_0 : i32, i32, i32
  }
}

</mosaic_0001>

<llo_original>
// kernel: tpu_custom_call.1
$region0: #{tpu_custom_call.1}
  #allocation0 [shape = 'u32[]', space=smem, size = 0x4, offset = 0x4, fixed_abs, tag = 'smem constant byte address 0x4 - core index']
  #allocation1 [shape = 'u32[72,128]{1,0:T(1,128)}', space=vmem, size = 0x9000, scoped, tag = 'internal scratch']
  %s0 = inlined_call_operand.vmem [shape: bf16[2,16,64], index: 0, kind: input, shape index: {}]
  %s1 = inlined_call_operand.vmem [shape: bf16[2,32,4], index: 1, kind: input, shape index: {}]
  %s2 = inlined_call_operand.vmem [shape: bf16[32,32], index: 2, kind: input, shape index: {}]
  %s3 = inlined_call_operand.vmem [shape: f32[32,1], index: 3, kind: input, shape index: {}]
  %s4 = inlined_call_operand.vmem [shape: bf16[8,16], index: 4, kind: input, shape index: {}]
  %s5 = inlined_call_operand.vmem [shape: bf16[8,32], index: 5, kind: input, shape index: {}]
  %s6 = inlined_call_operand.vmem [shape: f32[8,2], index: 6, kind: input, shape index: {}]
  %s7 = inlined_call_operand.vmem [shape: bf16[4,64], index: 7, kind: input, shape index: {}]
  %s8 = inlined_call_operand.hbm [shape: bf16[64,1024], index: 8, kind: input, shape index: {}]
  %s9 = inlined_call_operand.hbm [shape: f32[2,8,1024], index: 9, kind: output, shape index: {}]
  %s10 = sld [smem:[#allocation0]]
  $region73: #{tpu_custom_call.1} parent=0
    _
  %s12 = ssub.s32 1, %s10
  %s13 = scalar_select 0, %s12, %s10
  $region1: #{tpu_custom_call.1} parent=0
    #allocation2 [shape = 'u8[131072]{0}', space=vmem, size = 0x20000, scoped, tag = 'input window, operand 8, single buffered']
    #allocation3 [shape = 's32[2]{0}', space=sflag, size = 0x8, scoped, tag = 'scoped memory for tpu_custom_call.1']
    #allocation4 [shape = 's32[2]{0}', space=sflag, size = 0x8, scoped, tag = 'scoped memory for tpu_custom_call.1']
    #allocation5 [shape = 'u8[65536]{0}', space=vmem, size = 0x10000, scoped, tag = 'output window, operand 0']
    %14 = vsyncpa [#allocation3], 0
    %15 = vsyncpa [#allocation4], 0
    %s16 = scalar_lea.sflag [#allocation4], 1
    %17 = vsyncpa %s16, 0
    loop: start=0, step=1, limit=4
    $region2: #{tpu_custom_call.1} parent=1 // loop_pre_header
      _
    $region3: #{tpu_custom_call.1} parent=1 // loop_header
      %s19 = sphi 0, %s23
      %p20 = scmp.ge.s32.totalorder %s19, 4
      %s29 = sphi 0, %s31
      %s32 = sphi 0, %s29
      %s33 = sphi 0, %s32
      %s49 = sphi 0, %s33
      %s55 = sphi 0, %s57
      %s58 = sphi 0, %s55
      %s59 = sphi 0, %s58
      %s75 = sphi 0, %s59
      %s79 = sphi 0, %s79
      %s81 = sphi 0, %s79
      %s82 = sphi 0, %s81
      %s96 = sphi 0, %s82
      %s100 = sphi 0, %s100
      %s102 = sphi 0, %s100
      %s103 = sphi 0, %s102
      %s117 = sphi 0, %s103
      %s121 = sphi 0, %s121
      %s123 = sphi 0, %s121
      %s124 = sphi 0, %s123
      %s138 = sphi 0, %s124
      %s142 = sphi 0, %s142
      %s144 = sphi 0, %s142
      %s145 = sphi 0, %s144
      %s159 = sphi 0, %s145
      %s163 = sphi 0, %s163
      %s165 = sphi 0, %s163
      %s166 = sphi 0, %s165
      %s180 = sphi 0, %s166
      %s184 = sphi 0, %s184
      %s186 = sphi 0, %s184
      %s187 = sphi 0, %s186
      %s201 = sphi 0, %s187
      %s205 = sphi 0, %s205
      %s207 = sphi 0, %s205
      %s208 = sphi 0, %s207
      %s222 = sphi 0, %s208
      %s228 = sphi 0, %s230
      %s231 = sphi 0, %s228
      %s232 = sphi 0, %s231
      %s248 = sphi 0, %s232
    $region4: #{tpu_custom_call.1} parent=1 // loop_header_branch
      %22 = sbr.rel (%p20) target = $region8
    $region5: #{tpu_custom_call.1} parent=1 // loop_body
      %s24 = ssub.s32 %s19, 1
      %s25 = ssub.s32 %s19, 2
      %s26 = sadd.s32 %s19, 1
      %s27 = ssub.s32 %s19, %s26
      %p28 = scmp.eq.s32.totalorder %s27, 0
      %s30 = sadd.s32 %s29, 1
      %s31 = scalar_select %p28, %s29, %s30
      %p34 = pneg %p28
      %p35 = scmp.eq.s32.totalorder %s19, 1
      %p36 = por %p34, %p35
      %p37 = scmp.ne.s32.totalorder %s29, %s32
      %p38 = scmp.eq.s32.totalorder %s19, 0
      %p39 = por %p37, %p38
      %p40 = scmp.ne.s32.totalorder %s29, %s32
      %p41 = scmp.eq.s32.totalorder %s24, 1
      %p42 = por %p40, %p41
      %p43 = scmp.ne.s32.totalorder %s32, %s33
      %p44 = scmp.eq.s32.totalorder %s24, 0
      %p45 = por %p43, %p44
      %p46 = scmp.ne.s32.totalorder %s32, %s33
      %p47 = scmp.eq.s32.totalorder %s25, 1
      %p48 = por %p46, %p47
      %p50 = scmp.ne.s32.totalorder %s33, %s49
      %p51 = scmp.eq.s32.totalorder %s25, 0
      %p52 = por %p50, %p51
      %s53 = ssub.s32 %s19, %s26
      %p54 = scmp.eq.s32.totalorder %s53, 0
      %s56 = sadd.s32 %s55, 1
      %s57 = scalar_select %p54, %s55, %s56
      %p60 = pneg %p54
      %p61 = scmp.eq.s32.totalorder %s19, 1
      %p62 = por %p60, %p61
      %p63 = scmp.ne.s32.totalorder %s55, %s58
      %p64 = scmp.eq.s32.totalorder %s19, 0
      %p65 = por %p63, %p64
      %p66 = scmp.ne.s32.totalorder %s55, %s58
      %p67 = scmp.eq.s32.totalorder %s24, 1
      %p68 = por %p66, %p67
      %p69 = scmp.ne.s32.totalorder %s58, %s59
      %p70 = scmp.eq.s32.totalorder %s24, 0
      %p71 = por %p69, %p70
      %p72 = scmp.ne.s32.totalorder %s58, %s59
      %p73 = scmp.eq.s32.totalorder %s25, 1
      %p74 = por %p72, %p73
      %p76 = scmp.ne.s32.totalorder %s59, %s75
      %p77 = scmp.eq.s32.totalorder %s25, 0
      %p78 = por %p76, %p77
      %s80 = sadd.s32 %s79, 1
      %p83 = scmp.eq.s32.totalorder %s19, 1
      %p84 = scmp.ne.s32.totalorder %s79, %s81
      %p85 = scmp.eq.s32.totalorder %s19, 0
      %p86 = por %p84, %p85
      %p87 = scmp.ne.s32.totalorder %s79, %s81
      %p88 = scmp.eq.s32.totalorder %s24, 1
      %p89 = por %p87, %p88
      %p90 = scmp.ne.s32.totalorder %s81, %s82
      %p91 = scmp.eq.s32.totalorder %s24, 0
      %p92 = por %p90, %p91
      %p93 = scmp.ne.s32.totalorder %s81, %s82
      %p94 = scmp.eq.s32.totalorder %s25, 1
      %p95 = por %p93, %p94
      %p97 = scmp.ne.s32.totalorder %s82, %s96
      %p98 = scmp.eq.s32.totalorder %s25, 0
      %p99 = por %p97, %p98
      %s101 = sadd.s32 %s100, 1
      %p104 = scmp.eq.s32.totalorder %s19, 1
      %p105 = scmp.ne.s32.totalorder %s100, %s102
      %p106 = scmp.eq.s32.totalorder %s19, 0
      %p107 = por %p105, %p106
      %p108 = scmp.ne.s32.totalorder %s100, %s102
      %p109 = scmp.eq.s32.totalorder %s24, 1
      %p110 = por %p108, %p109
      %p111 = scmp.ne.s32.totalorder %s102, %s103
      %p112 = scmp.eq.s32.totalorder %s24, 0
      %p113 = por %p111, %p112
      %p114 = scmp.ne.s32.totalorder %s102, %s103
      %p115 = scmp.eq.s32.totalorder %s25, 1
      %p116 = por %p114, %p115
      %p118 = scmp.ne.s32.totalorder %s103, %s117
      %p119 = scmp.eq.s32.totalorder %s25, 0
      %p120 = por %p118, %p119
      %s122 = sadd.s32 %s121, 1
      %p125 = scmp.eq.s32.totalorder %s19, 1
      %p126 = scmp.ne.s32.totalorder %s121, %s123
      %p127 = scmp.eq.s32.totalorder %s19, 0
      %p128 = por %p126, %p127
      %p129 = scmp.ne.s32.totalorder %s121, %s123
      %p130 = scmp.eq.s32.totalorder %s24, 1
      %p131 = por %p129, %p130
      %p132 = scmp.ne.s32.totalorder %s123, %s124
      %p133 = scmp.eq.s32.totalorder %s24, 0
      %p134 = por %p132, %p133
      %p135 = scmp.ne.s32.totalorder %s123, %s124
      %p136 = scmp.eq.s32.totalorder %s25, 1
      %p137 = por %p135, %p136
      %p139 = scmp.ne.s32.totalorder %s124, %s138
      %p140 = scmp.eq.s32.totalorder %s25, 0
      %p141 = por %p139, %p140
      %s143 = sadd.s32 %s142, 1
      %p146 = scmp.eq.s32.totalorder %s19, 1
      %p147 = scmp.ne.s32.totalorder %s142, %s144
      %p148 = scmp.eq.s32.totalorder %s19, 0
      %p149 = por %p147, %p148
      %p150 = scmp.ne.s32.totalorder %s142, %s144
      %p151 = scmp.eq.s32.totalorder %s24, 1
      %p152 = por %p150, %p151
      %p153 = scmp.ne.s32.totalorder %s144, %s145
      %p154 = scmp.eq.s32.totalorder %s24, 0
      %p155 = por %p153, %p154
      %p156 = scmp.ne.s32.totalorder %s144, %s145
      %p157 = scmp.eq.s32.totalorder %s25, 1
      %p158 = por %p156, %p157
      %p160 = scmp.ne.s32.totalorder %s145, %s159
      %p161 = scmp.eq.s32.totalorder %s25, 0
      %p162 = por %p160, %p161
      %s164 = sadd.s32 %s163, 1
      %p167 = scmp.eq.s32.totalorder %s19, 1
      %p168 = scmp.ne.s32.totalorder %s163, %s165
      %p169 = scmp.eq.s32.totalorder %s19, 0
      %p170 = por %p168, %p169
      %p171 = scmp.ne.s32.totalorder %s163, %s165
      %p172 = scmp.eq.s32.totalorder %s24, 1
      %p173 = por %p171, %p172
      %p174 = scmp.ne.s32.totalorder %s165, %s166
      %p175 = scmp.eq.s32.totalorder %s24, 0
      %p176 = por %p174, %p175
      %p177 = scmp.ne.s32.totalorder %s165, %s166
      %p178 = scmp.eq.s32.totalorder %s25, 1
      %p179 = por %p177, %p178
      %p181 = scmp.ne.s32.totalorder %s166, %s180
      %p182 = scmp.eq.s32.totalorder %s25, 0
      %p183 = por %p181, %p182
      %s185 = sadd.s32 %s184, 1
      %p188 = scmp.eq.s32.totalorder %s19, 1
      %p189 = scmp.ne.s32.totalorder %s184, %s186
      %p190 = scmp.eq.s32.totalorder %s19, 0
      %p191 = por %p189, %p190
      %p192 = scmp.ne.s32.totalorder %s184, %s186
      %p193 = scmp.eq.s32.totalorder %s24, 1
      %p194 = por %p192, %p193
      %p195 = scmp.ne.s32.totalorder %s186, %s187
      %p196 = scmp.eq.s32.totalorder %s24, 0
      %p197 = por %p195, %p196
      %p198 = scmp.ne.s32.totalorder %s186, %s187
      %p199 = scmp.eq.s32.totalorder %s25, 1
      %p200 = por %p198, %p199
      %p202 = scmp.ne.s32.totalorder %s187, %s201
      %p203 = scmp.eq.s32.totalorder %s25, 0
      %p204 = por %p202, %p203
      %s206 = sadd.s32 %s205, 1
      %p209 = scmp.eq.s32.totalorder %s19, 1
      %p210 = scmp.ne.s32.totalorder %s205, %s207
      %p211 = scmp.eq.s32.totalorder %s19, 0
      %p212 = por %p210, %p211
      %p213 = scmp.ne.s32.totalorder %s205, %s207
      %p214 = scmp.eq.s32.totalorder %s24, 1
      %p215 = por %p213, %p214
      %p216 = scmp.ne.s32.totalorder %s207, %s208
      %p217 = scmp.eq.s32.totalorder %s24, 0
      %p218 = por %p216, %p217
      %p219 = scmp.ne.s32.totalorder %s207, %s208
      %p220 = scmp.eq.s32.totalorder %s25, 1
      %p221 = por %p219, %p220
      %p223 = scmp.ne.s32.totalorder %s208, %s222
      %p224 = scmp.eq.s32.totalorder %s25, 0
      %p225 = por %p223, %p224
      %s226 = ssub.s32 %s19, %s26
      %p227 = scmp.eq.s32.totalorder %s226, 0
      %s229 = sadd.s32 %s228, 1
      %s230 = scalar_select %p227, %s228, %s229
      %p233 = pneg %p227
      %p234 = scmp.eq.s32.totalorder %s19, 1
      %p235 = por %p233, %p234
      %p236 = scmp.ne.s32.totalorder %s228, %s231
      %p237 = scmp.eq.s32.totalorder %s19, 0
      %p238 = por %p236, %p237
      %p239 = scmp.ne.s32.totalorder %s228, %s231
      %p240 = scmp.eq.s32.totalorder %s24, 1
      %p241 = por %p239, %p240
      %p242 = scmp.ne.s32.totalorder %s231, %s232
      %p243 = scmp.eq.s32.totalorder %s24, 0
      %p244 = por %p242, %p243
      %p245 = scmp.ne.s32.totalorder %s231, %s232
      %p246 = scmp.eq.s32.totalorder %s25, 1
      %p247 = por %p245, %p246
      %p249 = scmp.ne.s32.totalorder %s232, %s248
      %p250 = scmp.eq.s32.totalorder %s25, 0
      %p251 = por %p249, %p250
      %p252 = scmp.le.s32.totalorder 1, %s19
      %p253 = scmp.lt.s32.totalorder %s19, 3
      %p254 = pnand %p252, %p253
      %p255 = pneg %p254
      // Predicated region
      $region9: #{tpu_custom_call.1} parent=5 // pred_check
        _
      $region10: #{tpu_custom_call.1} parent=5 // pred_check_branch
        %257 = sbr.rel (%p254) target = $region12
      $region11: #{tpu_custom_call.1} parent=5 // pred_region
        %s258 = ssub.s32 %s19, 1
        // Predicated region
        $region13: #{tpu_custom_call.1} parent=11 // pred_check
          %p259 = pneg %p92
        $region14: #{tpu_custom_call.1} parent=11 // pred_check_branch
          %261 = sbr.rel (%p259) target = $region16
        $region15: #{tpu_custom_call.1} parent=11 // pred_region
          _
        $region16: #{tpu_custom_call.1} parent=11 // pred_fallthru
          _
        // Predicated region
        $region17: #{tpu_custom_call.1} parent=11 // pred_check
          %p262 = pneg %p113
        $region18: #{tpu_custom_call.1} parent=11 // pred_check_branch
          %264 = sbr.rel (%p262) target = $region20
        $region19: #{tpu_custom_call.1} parent=11 // pred_region
          _
        $region20: #{tpu_custom_call.1} parent=11 // pred_fallthru
          _
        // Predicated region
        $region21: #{tpu_custom_call.1} parent=11 // pred_check
          %p265 = pneg %p134
        $region22: #{tpu_custom_call.1} parent=11 // pred_check_branch
          %267 = sbr.rel (%p265) target = $region24
        $region23: #{tpu_custom_call.1} parent=11 // pred_region
          _
        $region24: #{tpu_custom_call.1} parent=11 // pred_fallthru
          _
        // Predicated region
        $region25: #{tpu_custom_call.1} parent=11 // pred_check
          %p268 = pneg %p155
        $region26: #{tpu_custom_call.1} parent=11 // pred_check_branch
          %270 = sbr.rel (%p268) target = $region28
        $region27: #{tpu_custom_call.1} parent=11 // pred_region
          _
        $region28: #{tpu_custom_call.1} parent=11 // pred_fallthru
          _
        // Predicated region
        $region29: #{tpu_custom_call.1} parent=11 // pred_check
          %p271 = pneg %p176
        $region30: #{tpu_custom_call.1} parent=11 // pred_check_branch
          %273 = sbr.rel (%p271) target = $region32
        $region31: #{tpu_custom_call.1} parent=11 // pred_region
          _
        $region32: #{tpu_custom_call.1} parent=11 // pred_fallthru
          _
        // Predicated region
        $region33: #{tpu_custom_call.1} parent=11 // pred_check
          %p274 = pneg %p197
        $region34: #{tpu_custom_call.1} parent=11 // pred_check_branch
          %276 = sbr.rel (%p274) target = $region36
        $region35: #{tpu_custom_call.1} parent=11 // pred_region
          _
        $region36: #{tpu_custom_call.1} parent=11 // pred_fallthru
          _
        // Predicated region
        $region37: #{tpu_custom_call.1} parent=11 // pred_check
          %p277 = pneg %p218
        $region38: #{tpu_custom_call.1} parent=11 // pred_check_branch
          %279 = sbr.rel (%p277) target = $region40
        $region39: #{tpu_custom_call.1} parent=11 // pred_region
          %281 = vsyncadd [#allocation3], 0
          %s282 = sshll.u32 %s8, 4
          %s283 = int_to_ptr.hbm [resolvable:$true] %s282
          %s284 = sshll.u32 [#allocation2], 4
          %s285 = int_to_ptr.vmem [resolvable:$true] %s284
          %290 = dma.hbm_to_vmem [thread:$0]  %s283, 4096, %s285, [#allocation3], 512, 512, 32
        $region40: #{tpu_custom_call.1} parent=11 // pred_fallthru
          _
      $region12: #{tpu_custom_call.1} parent=5 // pred_fallthru
        _
      %p291 = scmp.lt.s32.totalorder %s19, 2
      // Predicated region
      $region41: #{tpu_custom_call.1} parent=5 // pred_check
        %p292 = pneg %p291
      $region42: #{tpu_custom_call.1} parent=5 // pred_check_branch
        %294 = sbr.rel (%p292) target = $region44
      $region43: #{tpu_custom_call.1} parent=5 // pred_region
        // Predicated region
        $region45: #{tpu_custom_call.1} parent=43 // pred_check
          %p295 = pneg %p39
        $region46: #{tpu_custom_call.1} parent=43 // pred_check_branch
          %297 = sbr.rel (%p295) target = $region48
        $region47: #{tpu_custom_call.1} parent=43 // pred_region
          %p298 = scmp.lt.s32.totalorder %s19, 1
          %s299 = scalar_select %p298, %s19, 1
          %s300 = smul.addr %s299, 2
          %s301 = smul.addr %s300, 4
          %s302 = scalar_lea.vmem %s0, %s301
        $region48: #{tpu_custom_call.1} parent=43 // pred_fallthru
          _
        // Predicated region
        $region49: #{tpu_custom_call.1} parent=43 // pred_check
          %p303 = pneg %p65
        $region50: #{tpu_custom_call.1} parent=43 // pred_check_branch
          %305 = sbr.rel (%p303) target = $region52
        $region51: #{tpu_custom_call.1} parent=43 // pred_region
          %p306 = scmp.lt.s32.totalorder %s19, 1
          %s307 = scalar_select %p306, %s19, 1
          %s308 = smul.addr %s307, 4
          %s309 = smul.addr %s308, 4
          %s310 = scalar_lea.vmem %s1, %s309
        $region52: #{tpu_custom_call.1} parent=43 // pred_fallthru
          _
      $region44: #{tpu_custom_call.1} parent=5 // pred_fallthru
        _
      %p311 = scmp.le.s32.totalorder 1, %s19
      %p312 = scmp.lt.s32.totalorder %s19, 3
      %p313 = pnand %p311, %p312
      %p314 = pneg %p313
      // Predicated region
      $region53: #{tpu_custom_call.1} parent=5 // pred_check
        _
      $region54: #{tpu_custom_call.1} parent=5 // pred_check_branch
        %316 = sbr.rel (%p313) target = $region56
      $region55: #{tpu_custom_call.1} parent=5 // pred_region
        %s317 = ssub.s32 %s19, 1
        // Predicated region
        $region57: #{tpu_custom_call.1} parent=55 // pred_check
          %p318 = pneg %p218
        $region58: #{tpu_custom_call.1} parent=55 // pred_check_branch
          %320 = sbr.rel (%p318) target = $region60
        $region59: #{tpu_custom_call.1} parent=55 // pred_region
          %322 = dma.done [#allocation3], 4096
        $region60: #{tpu_custom_call.1} parent=55 // pred_fallthru
          _
        %p323 = scmp.lt.s32.totalorder %s24, 1
        %s324 = scalar_select %p323, %s24, 1
        %s325 = smul.addr %s324, 2
        %s326 = smul.addr %s325, 4
        %s327 = scalar_lea.vmem %s0, %s326
        %p328 = pneg %p45
        %p329 = pneg %p42
        %p330 = scmp.lt.s32.totalorder %s24, 1
        %s331 = scalar_select %p330, %s24, 1
        %s332 = smul.addr %s331, 4
        %s333 = smul.addr %s332, 4
        %s334 = scalar_lea.vmem %s1, %s333
        %p335 = pneg %p71
        %p336 = pneg %p68
        %p337 = pneg %p92
        %p338 = pneg %p89
        %p339 = pneg %p113
        %p340 = pneg %p110
        %p341 = pneg %p134
        %p342 = pneg %p131
        %p343 = pneg %p155
        %p344 = pneg %p152
        %p345 = pneg %p176
        %p346 = pneg %p173
        %p347 = pneg %p197
        %p348 = pneg %p194
        %p349 = pneg %p218
        %p350 = pneg %p215
        %p351 = pneg %p244
        %p352 = pneg %p241
        %s353 = sand.u32 %s231, 1
        %s354 = scalar_lea.sflag [#allocation4], %s353
        %s355 = sand.u32 %s231, 1
        %s356 = smul.addr %s355, 64
        %s357 = scalar_lea.vmem [#allocation5], %s356
        %p358 = scmp.lt.s32.totalorder %s24, 1
        %s359 = scalar_select %p358, %s24, 1
        %s360 = smul.addr %s359, 2
        %s361 = smul.addr %s360, 4
        %s362 = scalar_lea.vmem %s0, %s361
        %p363 = scmp.lt.s32.totalorder %s24, 1
        %s364 = scalar_select %p363, %s24, 1
        %s365 = smul.addr %s364, 4
        %s366 = smul.addr %s365, 4
        %s367 = scalar_lea.vmem %s1, %s366
        %v369 = vld [vmem:[%s362] sm:$0xf]
        %v370 = vld [vmem:[%s362 + $0x4] sm:$0xf]
        %v371 = vld [vmem:[%s367] sm:$0xf]
        %v372 = vld [vmem:[%s367 + $0x4] sm:$0xf]
        %v373 = vld [vmem:[%s367 + $0x8] sm:$0xf]
        %v374 = vld [vmem:[%s367 + $0xc] sm:$0xf]
        %v375 = vld [vmem:[%s6] sm:$0xff]
        %v376 = vld [vmem:[%s2] sm:$0xf]
        %v377 = vld [vmem:[%s2 + $0x4] sm:$0xf]
        %v378 = vld [vmem:[%s2 + $0x8] sm:$0xf]
        %v379 = vld [vmem:[%s2 + $0xc] sm:$0xf]
        %v380 = vld [vmem:[%s3] sm:$0xff]
        %v381 = vld [vmem:[%s3 + $0x8] sm:$0xff]
        %v382 = vld [vmem:[%s3 + $0x10] sm:$0xff]
        %v383 = vld [vmem:[%s3 + $0x18] sm:$0xff]
        %385 = vset.pattern.permute.xlu0 0
        %386 = vperm.xlu0 %385, %v380
        %v387 = vpop.permute.xlu0 %386
        %390 = vset.pattern.permute.xlu0 0
        %391 = vperm.xlu0 %390, %v381
        %v392 = vpop.permute.xlu0 %391
        %395 = vset.pattern.permute.xlu0 0
        %396 = vperm.xlu0 %395, %v382
        %v397 = vpop.permute.xlu0 %396
        %400 = vset.pattern.permute.xlu0 0
        %401 = vperm.xlu0 %400, %v383
        %v402 = vpop.permute.xlu0 %401
        %v408 = vunpack.c.l.b16 %v376
        %v409 = vunpack.c.l.b16 %v377
        %v410 = vunpack.c.l.b16 %v378
        %v411 = vunpack.c.l.b16 %v379
        %v412 = vpack.c.b16 %v409, %v408
        %v413 = vpack.c.b16 %v411, %v410
        %v418 = vunpack.c.l.b16 %v371
        %v419 = vunpack.c.l.b16 %v372
        %v420 = vunpack.c.l.b16 %v373
        %v421 = vunpack.c.l.b16 %v374
        %v422 = vpack.c.b16 %v419, %v418
        %v423 = vpack.c.b16 %v421, %v420
        %vm426 = vcmask 261120
        %v428 = vsel %vm426, %v412, 0
        %v431 = vsel %vm426, %v413, 0
        %433 = vmatpush.bf16.msra.mxu0 0
        %434 = vmatpush.bf16.msra.mxu0 0
        %435 = vmatpush.bf16.msra.mxu0 0
        %436 = vmatpush.bf16.msra.mxu0 0
        %437 = vmatpush.bf16.msra.mxu0 0
        %438 = vmatpush.bf16.msra.mxu0 0
        %439 = vmatpush.bf16.msra.mxu0 %v423
        %440 = vmatpush.bf16.msra.mxu0 %v422
        %441 = vmatmul.bf16.gmra.mxu0 %v428
        %v442 = vpop.f32.mrf.mxu0
        %v443 = vadd.f32 %v387, %v442
        %v444 = vpop.f32.mrf.mxu0
        %v445 = vadd.f32 %v392, %v444
        %446 = vmatmul.bf16.gmra.mxu0 %v431
        %v447 = vpop.f32.mrf.mxu0
        %v448 = vadd.f32 %v397, %v447
        %v449 = vpop.f32.mrf.mxu0
        %v450 = vadd.f32 %v402, %v449
        %451 = vdwg.mxu0
        %v452 = vmax.f32 %v443, 0.0
        %v453 = vmax.f32 %v445, 0.0
        %v454 = vmax.f32 %v448, 0.0
        %v455 = vmax.f32 %v450, 0.0
        %v456 = vld [vmem:[%s4] sm:$0xf]
        %458 = vset.pattern.permute.xlu0 0
        %459 = vperm.xlu0 %458, %v375
        %v460 = vpop.permute.xlu0 %459
        %v464 = vunpack.c.l.b16 %v369
        %v465 = vunpack.c.l.b16 %v370
        %v466 = vpack.c.b16 %v465, %v464
        %vm468 = vcmask 130048
        %v470 = vsel %vm468, %v456, 0
        %472 = vmatpush.bf16.msra.mxu0 0
        %473 = vmatpush.bf16.msra.mxu0 0
        %474 = vmatpush.bf16.msra.mxu0 0
        %475 = vmatpush.bf16.msra.mxu0 0
        %476 = vmatpush.bf16.msra.mxu0 0
        %477 = vmatpush.bf16.msra.mxu0 0
        %478 = vmatpush.bf16.msra.mxu0 0
        %479 = vmatpush.bf16.msra.mxu0 %v466
        %480 = vmatmul.bf16.gmra.mxu0 %v470
        %v481 = vpop.f32.mrf.mxu0
        %v482 = vadd.f32 %v460, %v481
        %v483 = vpop.f32.mrf.mxu0
        %484 = vdwg.mxu0
        %v485 = vld [vmem:[%s5] sm:$0xf]
        %v486 = vpack.c.bf16 %v453, %v452
        %v487 = vpack.c.bf16 %v455, %v454
        %488 = vset.pattern.permute.xlu0 1
        %489 = vperm.xlu0 %488, %v375
        %v490 = vpop.permute.xlu0 %489
        %v493 = vsel %vm426, %v485, 0
        %495 = vmatpush.bf16.msra.mxu0 0
        %496 = vmatpush.bf16.msra.mxu0 0
        %497 = vmatpush.bf16.msra.mxu0 0
        %498 = vmatpush.bf16.msra.mxu0 0
        %499 = vmatpush.bf16.msra.mxu0 0
        %500 = vmatpush.bf16.msra.mxu0 0
        %501 = vmatpush.bf16.msra.mxu0 %v487
        %502 = vmatpush.bf16.msra.mxu0 %v486
        %503 = vmatmul.bf16.gmra.mxu0 %v493
        %v504 = vpop.f32.mrf.mxu0
        %v505 = vadd.f32 %v490, %v504
        %v506 = vpop.f32.mrf.mxu0
        %507 = vdwg.mxu0
        %v508 = vpack.c.bf16 %v505, %v505
        %v509 = vld [vmem:[%s7] sm:$0x3]
        %vm510 = vcmask 31744
        %v512 = vsel %vm510, %v508, 0
        %vm514 = vcmask 1041408
        %v516 = vsel %vm514, %v509, 0
        %518 = vmatpush.bf16.msra.mxu0 0
        %519 = vmatpush.bf16.msra.mxu0 0
        %520 = vmatpush.bf16.msra.mxu0 0
        %521 = vmatpush.bf16.msra.mxu0 0
        %522 = vmatpush.bf16.msra.mxu0 0
        %523 = vmatpush.bf16.msra.mxu0 0
        %524 = vmatpush.bf16.msra.mxu0 0
        %525 = vmatpush.bf16.msra.mxu0 %v516
        %526 = vmatmul.bf16.gmra.mxu0 %v512
        %v527 = vpop.f32.mrf.mxu0
        %v528 = vadd.f32 %v482, %v527
        %v529 = vpop.f32.mrf.mxu0
        %530 = vdwg.mxu0
        %v531 = vpack.c.bf16 %v528, %v528
        %v532 = vld [vmem:[#allocation2] sm:$0xff]
        %v533 = vld [vmem:[#allocation2 + $0x8] sm:$0xff]
        %v534 = vld [vmem:[#allocation2 + $0x10] sm:$0xff]
        %v535 = vld [vmem:[#allocation2 + $0x18] sm:$0xff]
        %v536 = vld [vmem:[#allocation2 + $0x20] sm:$0xff]
        %v537 = vld [vmem:[#allocation2 + $0x28] sm:$0xff]
        %v538 = vld [vmem:[#allocation2 + $0x30] sm:$0xff]
        %v539 = vld [vmem:[#allocation2 + $0x38] sm:$0xff]
        %v540 = vld [vmem:[#allocation2 + $0x40] sm:$0xff]
        %v541 = vld [vmem:[#allocation2 + $0x48] sm:$0xff]
        %v542 = vld [vmem:[#allocation2 + $0x50] sm:$0xff]
        %v543 = vld [vmem:[#allocation2 + $0x58] sm:$0xff]
        %v544 = vld [vmem:[#allocation2 + $0x60] sm:$0xff]
        %v545 = vld [vmem:[#allocation2 + $0x68] sm:$0xff]
        %v546 = vld [vmem:[#allocation2 + $0x70] sm:$0xff]
        %v547 = vld [vmem:[#allocation2 + $0x78] sm:$0xff]
        %v548 = vld [vmem:[#allocation2 + $0x80] sm:$0xff]
        %v549 = vld [vmem:[#allocation2 + $0x88] sm:$0xff]
        %v550 = vld [vmem:[#allocation2 + $0x90] sm:$0xff]
        %v551 = vld [vmem:[#allocation2 + $0x98] sm:$0xff]
        %v552 = vld [vmem:[#allocation2 + $0xa0] sm:$0xff]
        %v553 = vld [vmem:[#allocation2 + $0xa8] sm:$0xff]
        %v554 = vld [vmem:[#allocation2 + $0xb0] sm:$0xff]
        %v555 = vld [vmem:[#allocation2 + $0xb8] sm:$0xff]
        %v556 = vld [vmem:[#allocation2 + $0xc0] sm:$0xff]
        %v557 = vld [vmem:[#allocation2 + $0xc8] sm:$0xff]
        %v558 = vld [vmem:[#allocation2 + $0xd0] sm:$0xff]
        %v559 = vld [vmem:[#allocation2 + $0xd8] sm:$0xff]
        %v560 = vld [vmem:[#allocation2 + $0xe0] sm:$0xff]
        %v561 = vld [vmem:[#allocation2 + $0xe8] sm:$0xff]
        %v562 = vld [vmem:[#allocation2 + $0xf0] sm:$0xff]
        %v563 = vld [vmem:[#allocation2 + $0xf8] sm:$0xff]
        %v596 = vunpack.c.l.b16 %v532
        %v597 = vunpack.c.h.b16 %v532
        %v598 = vunpack.c.l.b16 %v533
        %v599 = vunpack.c.h.b16 %v533
        %v600 = vunpack.c.l.b16 %v534
        %v601 = vunpack.c.h.b16 %v534
        %v602 = vunpack.c.l.b16 %v535
        %v603 = vunpack.c.h.b16 %v535
        %v604 = vunpack.c.l.b16 %v536
        %v605 = vunpack.c.h.b16 %v536
        %v606 = vunpack.c.l.b16 %v537
        %v607 = vunpack.c.h.b16 %v537
        %v608 = vunpack.c.l.b16 %v538
        %v609 = vunpack.c.h.b16 %v538
        %v610 = vunpack.c.l.b16 %v539
        %v611 = vunpack.c.h.b16 %v539
        %v612 = vunpack.c.l.b16 %v540
        %v613 = vunpack.c.h.b16 %v540
        %v614 = vunpack.c.l.b16 %v541
        %v615 = vunpack.c.h.b16 %v541
        %v616 = vunpack.c.l.b16 %v542
        %v617 = vunpack.c.h.b16 %v542
        %v618 = vunpack.c.l.b16 %v543
        %v619 = vunpack.c.h.b16 %v543
        %v620 = vunpack.c.l.b16 %v544
        %v621 = vunpack.c.h.b16 %v544
        %v622 = vunpack.c.l.b16 %v545
        %v623 = vunpack.c.h.b16 %v545
        %v624 = vunpack.c.l.b16 %v546
        %v625 = vunpack.c.h.b16 %v546
        %v626 = vunpack.c.l.b16 %v547
        %v627 = vunpack.c.h.b16 %v547
        %v628 = vunpack.c.l.b16 %v548
        %v629 = vunpack.c.h.b16 %v548
        %v630 = vunpack.c.l.b16 %v549
        %v631 = vunpack.c.h.b16 %v549
        %v632 = vunpack.c.l.b16 %v550
        %v633 = vunpack.c.h.b16 %v550
        %v634 = vunpack.c.l.b16 %v551
        %v635 = vunpack.c.h.b16 %v551
        %v636 = vunpack.c.l.b16 %v552
        %v637 = vunpack.c.h.b16 %v552
        %v638 = vunpack.c.l.b16 %v553
        %v639 = vunpack.c.h.b16 %v553
        %v640 = vunpack.c.l.b16 %v554
        %v641 = vunpack.c.h.b16 %v554
        %v642 = vunpack.c.l.b16 %v555
        %v643 = vunpack.c.h.b16 %v555
        %v644 = vunpack.c.l.b16 %v556
        %v645 = vunpack.c.h.b16 %v556
        %v646 = vunpack.c.l.b16 %v557
        %v647 = vunpack.c.h.b16 %v557
        %v648 = vunpack.c.l.b16 %v558
        %v649 = vunpack.c.h.b16 %v558
        %v650 = vunpack.c.l.b16 %v559
        %v651 = vunpack.c.h.b16 %v559
        %v652 = vunpack.c.l.b16 %v560
        %v653 = vunpack.c.h.b16 %v560
        %v654 = vunpack.c.l.b16 %v561
        %v655 = vunpack.c.h.b16 %v561
        %v656 = vunpack.c.l.b16 %v562
        %v657 = vunpack.c.h.b16 %v562
        %v658 = vunpack.c.l.b16 %v563
        %v659 = vunpack.c.h.b16 %v563
        %v660 = vpack.c.b16 %v604, %v596
        %v661 = vpack.c.b16 %v605, %v597
        %v662 = vpack.c.b16 %v606, %v598
        %v663 = vpack.c.b16 %v607, %v599
        %v664 = vpack.c.b16 %v608, %v600
        %v665 = vpack.c.b16 %v609, %v601
        %v666 = vpack.c.b16 %v610, %v602
        %v667 = vpack.c.b16 %v611, %v603
        %v668 = vpack.c.b16 %v620, %v612
        %v669 = vpack.c.b16 %v621, %v613
        %v670 = vpack.c.b16 %v622, %v614
        %v671 = vpack.c.b16 %v623, %v615
        %v672 = vpack.c.b16 %v624, %v616
        %v673 = vpack.c.b16 %v625, %v617
        %v674 = vpack.c.b16 %v626, %v618
        %v675 = vpack.c.b16 %v627, %v619
        %v676 = vpack.c.b16 %v636, %v628
        %v677 = vpack.c.b16 %v637, %v629
        %v678 = vpack.c.b16 %v638, %v630
        %v679 = vpack.c.b16 %v639, %v631
        %v680 = vpack.c.b16 %v640, %v632
        %v681 = vpack.c.b16 %v641, %v633
        %v682 = vpack.c.b16 %v642, %v634
        %v683 = vpack.c.b16 %v643, %v635
        %v684 = vpack.c.b16 %v652, %v644
        %v685 = vpack.c.b16 %v653, %v645
        %v686 = vpack.c.b16 %v654, %v646
        %v687 = vpack.c.b16 %v655, %v647
        %v688 = vpack.c.b16 %v656, %v648
        %v689 = vpack.c.b16 %v657, %v649
        %v690 = vpack.c.b16 %v658, %v650
        %v691 = vpack.c.b16 %v659, %v651
        %vm724 = vcmask 523264
        %v726 = vsel %vm724, %v531, 0
        %728 = vmatpush.bf16.msra.mxu0 0
        %729 = vmatpush.bf16.msra.mxu0 0
        %730 = vmatpush.bf16.msra.mxu0 0
        %731 = vmatpush.bf16.msra.mxu0 0
        %732 = vmatpush.bf16.msra.mxu0 %v684
        %733 = vmatpush.bf16.msra.mxu0 %v676
        %734 = vmatpush.bf16.msra.mxu0 %v668
        %735 = vmatpush.bf16.msra.mxu0 %v660
        %736 = vmatmul.bf16.gmra.mxu0 %v726
        %v737 = vpop.f32.mrf.mxu0
        %v738 = vadd.f32 0.0, %v737
        %v739 = vpop.f32.mrf.mxu0
        %740 = vdwg.mxu0
        %741 = vmatpush.bf16.msra.mxu0 0
        %742 = vmatpush.bf16.msra.mxu0 0
        %743 = vmatpush.bf16.msra.mxu0 0
        %744 = vmatpush.bf16.msra.mxu0 0
        %745 = vmatpush.bf16.msra.mxu0 %v685
        %746 = vmatpush.bf16.msra.mxu0 %v677
        %747 = vmatpush.bf16.msra.mxu0 %v669
        %748 = vmatpush.bf16.msra.mxu0 %v661
        %749 = vmatmul.bf16.gmra.mxu0 %v726
        %v750 = vpop.f32.mrf.mxu0
        %v751 = vadd.f32 0.0, %v750
        %v752 = vpop.f32.mrf.mxu0
        %753 = vdwg.mxu0
        %754 = vmatpush.bf16.msra.mxu0 0
        %755 = vmatpush.bf16.msra.mxu0 0
        %756 = vmatpush.bf16.msra.mxu0 0
        %757 = vmatpush.bf16.msra.mxu0 0
        %758 = vmatpush.bf16.msra.mxu0 %v686
        %759 = vmatpush.bf16.msra.mxu0 %v678
        %760 = vmatpush.bf16.msra.mxu0 %v670
        %761 = vmatpush.bf16.msra.mxu0 %v662
        %762 = vmatmul.bf16.gmra.mxu0 %v726
        %v763 = vpop.f32.mrf.mxu0
        %v764 = vadd.f32 0.0, %v763
        %v765 = vpop.f32.mrf.mxu0
        %766 = vdwg.mxu0
        %767 = vmatpush.bf16.msra.mxu0 0
        %768 = vmatpush.bf16.msra.mxu0 0
        %769 = vmatpush.bf16.msra.mxu0 0
        %770 = vmatpush.bf16.msra.mxu0 0
        %771 = vmatpush.bf16.msra.mxu0 %v687
        %772 = vmatpush.bf16.msra.mxu0 %v679
        %773 = vmatpush.bf16.msra.mxu0 %v671
        %774 = vmatpush.bf16.msra.mxu0 %v663
        %775 = vmatmul.bf16.gmra.mxu0 %v726
        %v776 = vpop.f32.mrf.mxu0
        %v777 = vadd.f32 0.0, %v776
        %v778 = vpop.f32.mrf.mxu0
        %779 = vdwg.mxu0
        %780 = vmatpush.bf16.msra.mxu0 0
        %781 = vmatpush.bf16.msra.mxu0 0
        %782 = vmatpush.bf16.msra.mxu0 0
        %783 = vmatpush.bf16.msra.mxu0 0
        %784 = vmatpush.bf16.msra.mxu0 %v688
        %785 = vmatpush.bf16.msra.mxu0 %v680
        %786 = vmatpush.bf16.msra.mxu0 %v672
        %787 = vmatpush.bf16.msra.mxu0 %v664
        %788 = vmatmul.bf16.gmra.mxu0 %v726
        %v789 = vpop.f32.mrf.mxu0
        %v790 = vadd.f32 0.0, %v789
        %v791 = vpop.f32.mrf.mxu0
        %792 = vdwg.mxu0
        %793 = vmatpush.bf16.msra.mxu0 0
        %794 = vmatpush.bf16.msra.mxu0 0
        %795 = vmatpush.bf16.msra.mxu0 0
        %796 = vmatpush.bf16.msra.mxu0 0
        %797 = vmatpush.bf16.msra.mxu0 %v689
        %798 = vmatpush.bf16.msra.mxu0 %v681
        %799 = vmatpush.bf16.msra.mxu0 %v673
        %800 = vmatpush.bf16.msra.mxu0 %v665
        %801 = vmatmul.bf16.gmra.mxu0 %v726
        %v802 = vpop.f32.mrf.mxu0
        %v803 = vadd.f32 0.0, %v802
        %v804 = vpop.f32.mrf.mxu0
        %805 = vdwg.mxu0
        %806 = vmatpush.bf16.msra.mxu0 0
        %807 = vmatpush.bf16.msra.mxu0 0
        %808 = vmatpush.bf16.msra.mxu0 0
        %809 = vmatpush.bf16.msra.mxu0 0
        %810 = vmatpush.bf16.msra.mxu0 %v690
        %811 = vmatpush.bf16.msra.mxu0 %v682
        %812 = vmatpush.bf16.msra.mxu0 %v674
        %813 = vmatpush.bf16.msra.mxu0 %v666
        %814 = vmatmul.bf16.gmra.mxu0 %v726
        %v815 = vpop.f32.mrf.mxu0
        %v816 = vadd.f32 0.0, %v815
        %v817 = vpop.f32.mrf.mxu0
        %818 = vdwg.mxu0
        %819 = vmatpush.bf16.msra.mxu0 0
        %820 = vmatpush.bf16.msra.mxu0 0
        %821 = vmatpush.bf16.msra.mxu0 0
        %822 = vmatpush.bf16.msra.mxu0 0
        %823 = vmatpush.bf16.msra.mxu0 %v691
        %824 = vmatpush.bf16.msra.mxu0 %v683
        %825 = vmatpush.bf16.msra.mxu0 %v675
        %826 = vmatpush.bf16.msra.mxu0 %v667
        %827 = vmatmul.bf16.gmra.mxu0 %v726
        %v828 = vpop.f32.mrf.mxu0
        %v829 = vadd.f32 0.0, %v828
        %v830 = vpop.f32.mrf.mxu0
        %831 = vdwg.mxu0
        %832 = vst [vmem:[%s357] sm:$0xff] %v738
        %833 = vst [vmem:[%s357 + $0x8] sm:$0xff] %v751
        %834 = vst [vmem:[%s357 + $0x10] sm:$0xff] %v764
        %835 = vst [vmem:[%s357 + $0x18] sm:$0xff] %v777
        %836 = vst [vmem:[%s357 + $0x20] sm:$0xff] %v790
        %837 = vst [vmem:[%s357 + $0x28] sm:$0xff] %v803
        %838 = vst [vmem:[%s357 + $0x30] sm:$0xff] %v816
        %839 = vst [vmem:[%s357 + $0x38] sm:$0xff] %v829
        %s840 = sand.u32 %s231, 1
        %s841 = scalar_lea.sflag [#allocation4], %s840
        %s842 = sand.u32 %s231, 1
        %s843 = smul.addr %s842, 64
        %s844 = scalar_lea.vmem [#allocation5], %s843
        // Predicated region
        $region61: #{tpu_custom_call.1} parent=55 // pred_check
          %p845 = pneg %p241
        $region62: #{tpu_custom_call.1} parent=55 // pred_check_branch
          %847 = sbr.rel (%p845) target = $region64
        $region63: #{tpu_custom_call.1} parent=55 // pred_region
          %849 = vsyncadd %s841, 0
          %s850 = smul.addr %s24, 8
          %s851 = smul.addr %s850, 8
          %s852 = scalar_lea.hbm %s9, %s851
          %s854 = sshll.u32 %s844, 4
          %s855 = int_to_ptr.vmem [resolvable:$true] %s854
          %s856 = sshll.u32 %s852, 4
          %s857 = int_to_ptr.hbm [resolvable:$true] %s856
          %859 = dma.vmem_to_hbm [thread:$0]  %s855, 1024, %s857, %s841
        $region64: #{tpu_custom_call.1} parent=55 // pred_fallthru
          _
      $region56: #{tpu_custom_call.1} parent=5 // pred_fallthru
        _
      %p860 = scmp.le.s32.totalorder 2, %s19
      // Predicated region
      $region65: #{tpu_custom_call.1} parent=5 // pred_check
        %p861 = pneg %p860
      $region66: #{tpu_custom_call.1} parent=5 // pred_check_branch
        %863 = sbr.rel (%p861) target = $region68
      $region67: #{tpu_custom_call.1} parent=5 // pred_region
        %s864 = ssub.s32 %s19, 2
        // Predicated region
        $region69: #{tpu_custom_call.1} parent=67 // pred_check
          %p865 = pneg %p247
        $region70: #{tpu_custom_call.1} parent=67 // pred_check_branch
          %867 = sbr.rel (%p865) target = $region72
        $region71: #{tpu_custom_call.1} parent=67 // pred_region
          %s868 = sand.u32 %s232, 1
          %s869 = scalar_lea.sflag [#allocation4], %s868
          %s870 = sand.u32 %s232, 1
          %s871 = smul.addr %s870, 64
          %s872 = scalar_lea.vmem [#allocation5], %s871
          %874 = dma.done %s869, 1024
        $region72: #{tpu_custom_call.1} parent=67 // pred_fallthru
          _
      $region68: #{tpu_custom_call.1} parent=5 // pred_fallthru
        _
    $region6: #{tpu_custom_call.1} parent=1 // loop_footer
      %s23 = sadd.s32 1, %s19
    $region7: #{tpu_custom_call.1} parent=1 // loop_footer_branch
      %18 = sbr.rel target = $region3
    $region8: #{tpu_custom_call.1} parent=1 // loop_exit
      _
    %875 = vsyncpa [#allocation3], 1
    %s876 = scalar_lea.sflag [#allocation3], 1
    %877 = vsyncpa %s876, 1
    %878 = vsyncpa [#allocation4], 1
    %s879 = scalar_lea.sflag [#allocation4], 1
    %880 = vsyncpa %s879, 1

</llo_original>
